<compile_context>
chip_gen: v5e
topology: v5e:2x2
jax: 0.10.0
libtpu: 0.0.40
codegen_flags: <defaults>
</compile_context>

<pallas_src>
import math
import functools

import jax
import jax.numpy as jnp
from jax import lax
from jax.experimental import pallas as pl
from jax.experimental.pallas import tpu as pltpu


# ---------------------------------------------------------------------------
# VMEM-aware tiling policy
# ---------------------------------------------------------------------------
def _vmem_capacity_bytes():
    try:
        return int(pltpu.get_tpu_info().vmem_capacity_bytes)
    except Exception:
        return 64 << 20          # conservative default (v7x per-TensorCore)


_VMEM_BYTES = _vmem_capacity_bytes()
_VMEM_LIMIT = int(min((_VMEM_BYTES * 3) // 4, 96 << 20))
_ROW_CAP = 512 if _VMEM_BYTES >= (100 << 20) else 256   # v5e/v6e: 512, v7x: 256


def _row_tile(m, cap=None):
    cap = _ROW_CAP if cap is None else cap
    return m if m <= cap else cap


def _cparams(*sems):
    return pltpu.CompilerParams(dimension_semantics=tuple(sems),
                                vmem_limit_bytes=_VMEM_LIMIT)


# ---------------------------------------------------------------------------
# Kernel 1: fused Q/K/V projections (one pallas_call, weights VMEM-resident)
# ---------------------------------------------------------------------------
def _proj3_kernel(xq_ref, xk_ref, xv_ref, wq_ref, wk_ref, wv_ref,
                  bq_ref, bk_ref, bv_ref, q_ref, k_ref, v_ref):
    cd = wq_ref.dtype          # bf16 weights => bf16 MXU operands, f32 accumulate
    q_ref[...] = (jnp.dot(xq_ref[...].astype(cd), wq_ref[...],
                          preferred_element_type=jnp.float32)
                  + bq_ref[...]).astype(q_ref.dtype)
    k_ref[...] = (jnp.dot(xk_ref[...].astype(cd), wk_ref[...],
                          preferred_element_type=jnp.float32)
                  + bk_ref[...]).astype(k_ref.dtype)
    v_ref[...] = (jnp.dot(xv_ref[...].astype(cd), wv_ref[...],
                          preferred_element_type=jnp.float32)
                  + bv_ref[...]).astype(v_ref.dtype)


def pallas_qkv_proj(xq, xk, xv, wq_t, wk_t, wv_t, bq, bk, bv, out_dtype):
    """xq/xk/xv: (M, Din); w*_t: (Din, Dout) pre-transposed; b*: (1, Dout)."""
    M, Din = xq.shape
    Dout = wq_t.shape[1]
    tm = _row_tile(M)
    row_in = pl.BlockSpec((tm, Din), lambda i: (i, 0))
    w_spec = pl.BlockSpec((Din, Dout), lambda i: (0, 0))   # resident across rows
    b_spec = pl.BlockSpec((1, Dout), lambda i: (0, 0))
    row_out = pl.BlockSpec((tm, Dout), lambda i: (i, 0))
    out_sds = jax.ShapeDtypeStruct((M, Dout), out_dtype)
    return pl.pallas_call(
        _proj3_kernel,
        out_shape=(out_sds, out_sds, out_sds),
        grid=(pl.cdiv(M, tm),),
        in_specs=[row_in, row_in, row_in, w_spec, w_spec, w_spec,
                  b_spec, b_spec, b_spec],
        out_specs=(row_out, row_out, row_out),
        compiler_params=_cparams("parallel"),
    )(xq, xk, xv, wq_t, wk_t, wv_t, bq, bk, bv)


# ---------------------------------------------------------------------------
# Kernel 1b: generic row- AND Dout-tiled linear (fallback / large d_model)
# ---------------------------------------------------------------------------
def _linear_kernel(x_ref, w_ref, b_ref, o_ref):
    cd = w_ref.dtype
    o_ref[...] = (jnp.dot(x_ref[...].astype(cd), w_ref[...],
                          preferred_element_type=jnp.float32)
                  + b_ref[...]).astype(o_ref.dtype)


def pallas_linear(x2d, w_t, b_row, out_dtype):
    M, Din = x2d.shape
    Dout = w_t.shape[1]
    tm = _row_tile(M)
    tn = Dout if Dout <= 512 else 512          # 512 = lane-dense multiple of 128
    return pl.pallas_call(
        _linear_kernel,
        out_shape=jax.ShapeDtypeStruct((M, Dout), out_dtype),
        grid=(pl.cdiv(M, tm), pl.cdiv(Dout, tn)),
        in_specs=[pl.BlockSpec((tm, Din), lambda i, j: (i, 0)),
                  pl.BlockSpec((Din, tn), lambda i, j: (0, j)),
                  pl.BlockSpec((1, tn), lambda i, j: (0, j))],
        out_specs=pl.BlockSpec((tm, tn), lambda i, j: (i, j)),
        compiler_params=_cparams("parallel", "parallel"),
    )(x2d, w_t, b_row)


# ---------------------------------------------------------------------------
# Kernel 2a: attention WITH weights output (module semantics path)
#            grid = (batch, head, q-tile); K/V full-Sk, VMEM-resident across q
# ---------------------------------------------------------------------------
def _attn_weights_body(q_ref, k_ref, v_ref, m_ref, o_ref, w_ref, *, scale, cd):
    # q @ k^T with the contraction on the LAST dim of both operands — no
    # in-kernel K transpose.
    s = lax.dot_general(q_ref[...].astype(cd), k_ref[...].astype(cd),
                        dimension_numbers=(((1,), (1,)), ((), ())),
                        preferred_element_type=jnp.float32) * scale
    if m_ref is not None:
        # exact masked_fill(mask == 0, -1e4) semantics (int8 mask widened here)
        s = jnp.where(m_ref[...] == 0, -10000.0, s)
    smax = jnp.max(s, axis=-1, keepdims=True)
    e = jnp.exp(s - smax)
    denom = jnp.sum(e, axis=-1, keepdims=True)
    # exact reciprocal kept here for the strict 1e-4 weights parity check;
    # approx=True (EUP) is used on the flash path.
    p = e * pl.reciprocal(denom)
    w_ref[...] = p.astype(w_ref.dtype)
    o_ref[...] = jnp.dot(p.astype(cd), v_ref[...].astype(cd),
                         preferred_element_type=jnp.float32).astype(o_ref.dtype)


def _attn_w_kernel_masked(q_ref, k_ref, v_ref, m_ref, o_ref, w_ref, **kw):
    _attn_weights_body(q_ref, k_ref, v_ref, m_ref, o_ref, w_ref, **kw)


def _attn_w_kernel_nomask(q_ref, k_ref, v_ref, o_ref, w_ref, **kw):
    _attn_weights_body(q_ref, k_ref, v_ref, None, o_ref, w_ref, **kw)


def pallas_attention_weights(q, k, v, mask_i8, out_dtype, compute_dtype, tq=None):
    """q: (B,H,Sq,dk); k: (B,H,Sk,dk); v: (B,H,Sk,dv); mask_i8: (B,1,Sq,Sk) or None."""
    B, H, Sq, dk = q.shape
    Sk = k.shape[2]
    dv = v.shape[3]
    scale = 1.0 / math.sqrt(dk)
    tq = _row_tile(Sq) if tq is None else min(tq, Sq)

    q_spec = pl.BlockSpec((None, None, tq, dk), lambda b, h, i: (b, h, i, 0))
    k_spec = pl.BlockSpec((None, None, Sk, dk), lambda b, h, i: (b, h, 0, 0))
    v_spec = pl.BlockSpec((None, None, Sk, dv), lambda b, h, i: (b, h, 0, 0))
    o_spec = pl.BlockSpec((None, None, tq, dv), lambda b, h, i: (b, h, i, 0))
    w_spec = pl.BlockSpec((None, None, tq, Sk), lambda b, h, i: (b, h, i, 0))
    out_shape = (jax.ShapeDtypeStruct((B, H, Sq, dv), out_dtype),
                 jax.ShapeDtypeStruct((B, H, Sq, Sk), jnp.float32))
    # q-tile axis "arbitrary" -> megacore (v7x) shards on (batch, head) only.
    cparams = _cparams("parallel", "parallel", "arbitrary")
    grid = (B, H, pl.cdiv(Sq, tq))

    if mask_i8 is not None:
        m_spec = pl.BlockSpec((None, None, tq, Sk), lambda b, h, i: (b, 0, i, 0))
        kernel = functools.partial(_attn_w_kernel_masked, scale=scale, cd=compute_dtype)
        return pl.pallas_call(kernel, out_shape=out_shape, grid=grid,
                              in_specs=[q_spec, k_spec, v_spec, m_spec],
                              out_specs=(o_spec, w_spec),
                              compiler_params=cparams)(q, k, v, mask_i8)
    kernel = functools.partial(_attn_w_kernel_nomask, scale=scale, cd=compute_dtype)
    return pl.pallas_call(kernel, out_shape=out_shape, grid=grid,
                          in_specs=[q_spec, k_spec, v_spec],
                          out_specs=(o_spec, w_spec),
                          compiler_params=cparams)(q, k, v)


# ---------------------------------------------------------------------------
# Kernel 2b: flash-style attention (no weights output)
#            grid = (batch, head, q-tile, kv-tile), online softmax in scratch
# ---------------------------------------------------------------------------
def _flash_body(q_ref, k_ref, v_ref, m_ref, o_ref, m_sc, l_sc, acc_sc, *,
                scale, cd, causal, tq, tk, sk):
    j = pl.program_id(3)

    @pl.when(j == 0)
    def _():
        m_sc[...] = jnp.full(m_sc.shape, -jnp.inf, m_sc.dtype)
        l_sc[...] = jnp.zeros(l_sc.shape, l_sc.dtype)
        acc_sc[...] = jnp.zeros(acc_sc.shape, acc_sc.dtype)

    s = lax.dot_general(q_ref[...].astype(cd), k_ref[...].astype(cd),
                        dimension_numbers=(((1,), (1,)), ((), ())),
                        preferred_element_type=jnp.float32) * scale

    need_col_guard = (sk % tk) != 0
    if causal or need_col_guard:
        col = j * tk + lax.broadcasted_iota(jnp.int32, (tq, tk), 1)
    if causal:
        # causal bias generated in-kernel: no mask DMA at all
        i = pl.program_id(2)
        row = i * tq + lax.broadcasted_iota(jnp.int32, (tq, tk), 0)
        s = jnp.where(col <= row, s, -10000.0)           # torch masked_fill value
    if m_ref is not None:
        s = jnp.where(m_ref[...] == 0, -10000.0, s)      # int8 mask widened here
    if need_col_guard:                                   # hide padded kv columns
        s = jnp.where(col < sk, s, -jnp.inf)

    m_prev = m_sc[...]
    m_new = jnp.maximum(m_prev, jnp.max(s, axis=-1, keepdims=True))
    alpha = jnp.exp(m_prev - m_new)
    p = jnp.exp(s - m_new)
    l_sc[...] = alpha * l_sc[...] + jnp.sum(p, axis=-1, keepdims=True)
    acc_sc[...] = alpha * acc_sc[...] + jnp.dot(p.astype(cd), v_ref[...].astype(cd),
                                                preferred_element_type=jnp.float32)
    m_sc[...] = m_new

    @pl.when(j == pl.num_programs(3) - 1)
    def _():
        o_ref[...] = (acc_sc[...] *
                      pl.reciprocal(l_sc[...], approx=True)).astype(o_ref.dtype)


def _flash_kernel_masked(q_ref, k_ref, v_ref, m_ref, o_ref, m_sc, l_sc, acc_sc, **kw):
    _flash_body(q_ref, k_ref, v_ref, m_ref, o_ref, m_sc, l_sc, acc_sc, **kw)


def _flash_kernel_nomask(q_ref, k_ref, v_ref, o_ref, m_sc, l_sc, acc_sc, **kw):
    _flash_body(q_ref, k_ref, v_ref, None, o_ref, m_sc, l_sc, acc_sc, **kw)


def pallas_flash_attention(q, k, v, mask_i8=None, causal=False, out_dtype=None,
                           compute_dtype=jnp.float32, tq=None, tk=None):
    B, H, Sq, dk = q.shape
    Sk = k.shape[2]
    dv = v.shape[3]
    scale = 1.0 / math.sqrt(dk)
    out_dtype = q.dtype if out_dtype is None else out_dtype
    tq = _row_tile(Sq) if tq is None else min(tq, Sq)
    tk = min(Sk, 512) if tk is None else min(tk, Sk)

    grid = (B, H, pl.cdiv(Sq, tq), pl.cdiv(Sk, tk))
    q_spec = pl.BlockSpec((None, None, tq, dk), lambda b, h, i, j: (b, h, i, 0))
    k_spec = pl.BlockSpec((None, None, tk, dk), lambda b, h, i, j: (b, h, j, 0))
    v_spec = pl.BlockSpec((None, None, tk, dv), lambda b, h, i, j: (b, h, j, 0))
    o_spec = pl.BlockSpec((None, None, tq, dv), lambda b, h, i, j: (b, h, i, 0))
    scratch = [pltpu.VMEM((tq, 1), jnp.float32),    # running max
               pltpu.VMEM((tq, 1), jnp.float32),    # running denom
               pltpu.VMEM((tq, dv), jnp.float32)]   # running accumulator
    # Megacore (v7x) shards on (batch, head); q/kv tile axes stay on one core so
    # K/V fetches never duplicate across cores.
    cparams = _cparams("parallel", "parallel", "arbitrary", "arbitrary")
    kw = dict(scale=scale, cd=compute_dtype, causal=causal, tq=tq, tk=tk, sk=Sk)
    out_shape = jax.ShapeDtypeStruct((B, H, Sq, dv), out_dtype)

    if mask_i8 is not None:
        m_spec = pl.BlockSpec((None, None, tq, tk), lambda b, h, i, j: (b, 0, i, j))
        kernel = functools.partial(_flash_kernel_masked, **kw)
        return pl.pallas_call(kernel, out_shape=out_shape, grid=grid,
                              in_specs=[q_spec, k_spec, v_spec, m_spec],
                              out_specs=o_spec, scratch_shapes=scratch,
                              compiler_params=cparams)(q, k, v, mask_i8)
    kernel = functools.partial(_flash_kernel_nomask, **kw)
    return pl.pallas_call(kernel, out_shape=out_shape, grid=grid,
                          in_specs=[q_spec, k_spec, v_spec],
                          out_specs=o_spec, scratch_shapes=scratch,
                          compiler_params=cparams)(q, k, v)


# ---------------------------------------------------------------------------
# Kernel 3: output projection + residual add + LayerNorm, fused & row-tiled
# ---------------------------------------------------------------------------
def _out_ln_kernel(x_ref, w_ref, b_ref, res_ref, g_ref, beta_ref, o_ref, *, eps):
    cd = w_ref.dtype
    y = jnp.dot(x_ref[...].astype(cd), w_ref[...],
                preferred_element_type=jnp.float32) + b_ref[...]
    y = y + res_ref[...]
    mean = jnp.mean(y, axis=-1, keepdims=True)
    var = jnp.mean(jnp.square(y - mean), axis=-1, keepdims=True)  # biased (torch LN)
    o_ref[...] = ((y - mean) * lax.rsqrt(var + eps) * g_ref[...]
                  + beta_ref[...]).astype(o_ref.dtype)


def pallas_out_proj_layernorm(x2d, wo_t, bo_row, res2d, g_row, beta_row, eps=1e-5):
    M, D = x2d.shape
    Dout = wo_t.shape[1]
    tm = _row_tile(M)
    kernel = functools.partial(_out_ln_kernel, eps=eps)
    return pl.pallas_call(
        kernel,
        out_shape=jax.ShapeDtypeStruct((M, Dout), jnp.float32),
        grid=(pl.cdiv(M, tm),),
        in_specs=[pl.BlockSpec((tm, D), lambda i: (i, 0)),
                  pl.BlockSpec((D, Dout), lambda i: (0, 0)),
                  pl.BlockSpec((1, Dout), lambda i: (0, 0)),
                  pl.BlockSpec((tm, Dout), lambda i: (i, 0)),
                  pl.BlockSpec((1, Dout), lambda i: (0, 0)),
                  pl.BlockSpec((1, Dout), lambda i: (0, 0))],
        out_specs=pl.BlockSpec((tm, Dout), lambda i: (i, 0)),
        compiler_params=_cparams("parallel"),
    )(x2d, wo_t, bo_row, res2d, g_row, beta_row)


# ---------------------------------------------------------------------------
# Parameter prep (weight transposes / casts hoisted out of the forward)
# ---------------------------------------------------------------------------
def prepare_params(params, compute_dtype=jnp.float32):
    """compute_dtype=jnp.bfloat16 feeds the MXU bf16 operands (v5e/v6e/v7x);
    all elementwise / softmax / LayerNorm math stays in f32."""
    D = params["W_q"].shape[0]
    cd = compute_dtype
    return {
        "n_heads": params["n_heads"],
        "compute_dtype": cd,
        "Wq_t": jnp.asarray(params["W_q"]).T.astype(cd),
        "Wk_t": jnp.asarray(params["W_k"]).T.astype(cd),
        "Wv_t": jnp.asarray(params["W_v"]).T.astype(cd),
        "Wo_t": jnp.asarray(params["W_o"]).T.astype(cd),
        "bq": jnp.asarray(params["b_q"], jnp.float32).reshape(1, D),
        "bk": jnp.asarray(params["b_k"], jnp.float32).reshape(1, D),
        "bv": jnp.asarray(params["b_v"], jnp.float32).reshape(1, D),
        "bo": jnp.asarray(params["b_o"], jnp.float32).reshape(1, D),
        "ln_gamma": jnp.asarray(params["ln_gamma"], jnp.float32).reshape(1, D),
        "ln_beta": jnp.asarray(params["ln_beta"], jnp.float32).reshape(1, D),
    }


# ---------------------------------------------------------------------------
# MultiHeadAttention forward
# ---------------------------------------------------------------------------
def multi_head_attention(prep, query, key, value, mask=None, residual=None,
                         return_weights=True, causal=False,
                         attn_tq=None, attn_tk=None):
    """return_weights=True  -> (output, attention_weights)  [module semantics]
       return_weights=False -> (output, None); flash-style kv-tiled attention.
       causal=True          -> mask generated in-kernel (mask must be None)."""
    B, Sq, D = query.shape
    Sk = key.shape[1]
    Sv = value.shape[1]
    H = prep["n_heads"]
    dk = D // H
    cd = prep["compute_dtype"]
    act_dtype = jnp.bfloat16 if cd == jnp.bfloat16 else jnp.float32
    itemsize = 2 if cd == jnp.bfloat16 else 4

    if causal and mask is not None:
        raise ValueError("pass either a dense mask or causal=True, not both")
    if residual is None:
        residual = query

    xq = query.reshape(-1, D)
    xk = key.reshape(-1, D)
    xv = value.reshape(-1, D)

    # Fused QKV (weights VMEM-resident) only while the three weights comfortably
    # fit the per-generation VMEM budget; otherwise Dout-tiled linears.
    w_bytes = 3 * D * D * itemsize
    if Sq == Sk == Sv and 2 * w_bytes <= _VMEM_LIMIT:
        q2d, k2d, v2d = pallas_qkv_proj(
            xq, xk, xv, prep["Wq_t"], prep["Wk_t"], prep["Wv_t"],
            prep["bq"], prep["bk"], prep["bv"], act_dtype)
    else:
        q2d = pallas_linear(xq, prep["Wq_t"], prep["bq"], act_dtype)
        k2d = pallas_linear(xk, prep["Wk_t"], prep["bk"], act_dtype)
        v2d = pallas_linear(xv, prep["Wv_t"], prep["bv"], act_dtype)

    # split_heads: (B, S, D) -> (B, H, S, d_k)
    def split(x2d, b, s):
        return x2d.reshape(b, s, H, dk).transpose(0, 2, 1, 3)

    qh, kh, vh = split(q2d, B, Sq), split(k2d, B, Sk), split(v2d, B, Sv)

    mask_i8 = None
    if mask is not None:
        m = jnp.asarray(mask)
        if m.ndim == 2:            # (B, Sk) -> (B, 1, 1, Sk)
            m = m[:, None, None, :]
        elif m.ndim == 3:          # (B, Sq, Sk) -> (B, 1, Sq, Sk)
            m = m[:, None, :, :]
        mask_i8 = jnp.broadcast_to(m != 0, (B, 1, Sq, Sk)).astype(jnp.int8)
    elif causal and return_weights:
        # Weights path materializes O(S^2) anyway; a host-built int8 causal mask
        # is not the traffic bottleneck there.  Flash path builds it in-kernel.
        tri = jnp.tril(jnp.ones((Sq, Sk), jnp.int8))
        mask_i8 = jnp.broadcast_to(tri[None, None, :, :], (B, 1, Sq, Sk))
        causal = False

    if return_weights:
        # TODO(synk): optionally emit the weights tensor in bf16 to halve its
        #             O(B*H*S^2) store traffic when strict f32 parity isn't needed.
        attn_out, attn_weights = pallas_attention_weights(
            qh, kh, vh, mask_i8, out_dtype=act_dtype, compute_dtype=cd, tq=attn_tq)
    else:
        attn_out = pallas_flash_attention(
            qh, kh, vh, mask_i8=mask_i8, causal=causal, out_dtype=act_dtype,
            compute_dtype=cd, tq=attn_tq, tk=attn_tk)
        attn_weights = None

    # combine_heads: (B, H, S, d_v) -> (B*S, D)
    combined = attn_out.transpose(0, 2, 1, 3).reshape(B * Sq, D)

    out2d = pallas_out_proj_layernorm(
        combined, prep["Wo_t"], prep["bo"],
        residual.reshape(-1, D).astype(jnp.float32),
        prep["ln_gamma"], prep["ln_beta"])
    return out2d.reshape(B, Sq, D), attn_weights


# ---------------------------------------------------------------------------
# Pure-JAX reference (torch-equivalent math, for the in-script parity check)
# ---------------------------------------------------------------------------
def reference_mha(params, query, key, value, mask):
    B, Sq, D = query.shape
    H = params["n_heads"]
    dk = D // H

    def lin(x, w, b):
        return x @ w.T + b

    q = lin(query, params["W_q"], params["b_q"])
    k = lin(key, params["W_k"], params["b_k"])
    v = lin(value, params["W_v"], params["b_v"])

    def split(x):
        b, s, _ = x.shape
        return x.reshape(b, s, H, dk).transpose(0, 2, 1, 3)

    qh, kh, vh = split(q), split(k), split(v)
    scores = jnp.einsum("bhqd,bhkd->bhqk", qh, kh) / math.sqrt(dk)
    scores = jnp.where(mask == 0, -10000.0, scores)
    w = jax.nn.softmax(scores, axis=-1)
    o = jnp.einsum("bhqk,bhkd->bhqd", w, vh)
    o = o.transpose(0, 2, 1, 3).reshape(B, Sq, D)
    o = o @ params["W_o"].T + params["b_o"] + query
    mean = o.mean(-1, keepdims=True)
    var = ((o - mean) ** 2).mean(-1, keepdims=True)
    o = (o - mean) / jnp.sqrt(var + 1e-5) * params["ln_gamma"] + params["ln_beta"]
    return o, w


if __name__ == "__main__":
    B, S, D, H = 2, 16, 32, 4

    key0 = jax.random.PRNGKey(0)
    keys = jax.random.split(key0, 12)

    params = {
        "n_heads": H,
        "W_q": jax.random.normal(keys[0], (D, D), jnp.float32) * 0.05,
        "b_q": jax.random.normal(keys[1], (D,), jnp.float32) * 0.01,
        "W_k": jax.random.normal(keys[2], (D, D), jnp.float32) * 0.05,
        "b_k": jax.random.normal(keys[3], (D,), jnp.float32) * 0.01,
        "W_v": jax.random.normal(keys[4], (D, D), jnp.float32) * 0.05,
        "b_v": jax.random.normal(keys[5], (D,), jnp.float32) * 0.01,
        "W_o": jax.random.normal(keys[6], (D, D), jnp.float32) * 0.05,
        "b_o": jax.random.normal(keys[7], (D,), jnp.float32) * 0.01,
        "ln_gamma": jnp.ones((D,), jnp.float32),
        "ln_beta": jnp.zeros((D,), jnp.float32),
    }
    prep_f32 = prepare_params(params)                       # f32 MXU operands
    prep_bf16 = prepare_params(params, jnp.bfloat16)        # bf16 MXU operands

    query = jax.random.normal(keys[8], (B, S, D), jnp.float32)
    key_in = jax.random.normal(keys[9], (B, S, D), jnp.float32)
    value = jax.random.normal(keys[10], (B, S, D), jnp.float32)

    # causal mask, [B, 1, S, S], 1 = keep, 0 = masked (-> -10000.0)
    causal01 = jnp.tril(jnp.ones((S, S), jnp.float32))
    mask = jnp.broadcast_to(causal01[None, None, :, :], (B, 1, S, S))

    ref_out, ref_w = reference_mha(params, query, key_in, value, mask)

    # 1) Module-semantics path: dense int8 mask, attention weights returned.
    out1, w1 = multi_head_attention(prep_f32, query, key_in, value, mask=mask,
                                    return_weights=True)
    out1 = jax.block_until_ready(out1)
    w1 = jax.block_until_ready(w1)
    assert out1.shape == (B, S, D) and w1.shape == (B, H, S, S)
    assert jnp.allclose(out1, ref_out, rtol=1e-4, atol=1e-4)
    assert jnp.allclose(w1, ref_w, rtol=1e-4, atol=1e-4)

    # 2) Flash path: kv-tiled online softmax, causal mask built in-kernel,
    #    no weights output (exercises multiple q/kv tiles: tq=tk=8 over S=16).
    out2, w2 = multi_head_attention(prep_f32, query, key_in, value, causal=True,
                                    return_weights=False, attn_tq=8, attn_tk=8)
    out2 = jax.block_until_ready(out2)
    assert w2 is None
    # looser tolerance: approx (EUP) reciprocal in the flash finalize
    assert jnp.allclose(out2, ref_out, rtol=2e-2, atol=2e-2)

    # 3) Flash path with a user-supplied dense int8 mask.
    out3, _ = multi_head_attention(prep_f32, query, key_in, value, mask=mask,
                                   return_weights=False)
    out3 = jax.block_until_ready(out3)
    assert jnp.allclose(out3, ref_out, rtol=2e-2, atol=2e-2)

    # 4) bf16 MXU-operand path (weights + dot operands bf16, f32 accumulate).
    out4, _ = multi_head_attention(prep_bf16, query, key_in, value, causal=True,
                                   return_weights=False)
    out4 = jax.block_until_ready(out4)
    assert jnp.allclose(out4, ref_out, rtol=5e-2, atol=5e-2)

    print("KERNEL_OK")
</pallas_src>

<mosaic_0001>
module attributes {stable_mosaic.version = 11 : i64} {
  func.func @_proj3_kernel(%arg0: i32, %arg1: memref<32x32xf32, #tpu.memory_space<vmem>>, %arg2: memref<32x32xf32, #tpu.memory_space<vmem>>, %arg3: memref<32x32xf32, #tpu.memory_space<vmem>>, %arg4: memref<32x32xf32, #tpu.memory_space<vmem>>, %arg5: memref<32x32xf32, #tpu.memory_space<vmem>>, %arg6: memref<32x32xf32, #tpu.memory_space<vmem>>, %arg7: memref<1x32xf32, #tpu.memory_space<vmem>>, %arg8: memref<1x32xf32, #tpu.memory_space<vmem>>, %arg9: memref<1x32xf32, #tpu.memory_space<vmem>>, %arg10: memref<32x32xf32, #tpu.memory_space<vmem>>, %arg11: memref<32x32xf32, #tpu.memory_space<vmem>>, %arg12: memref<32x32xf32, #tpu.memory_space<vmem>>) attributes {dimension_semantics = [#tpu.dimension_semantics<parallel>], iteration_bounds = array<i64: 1>, scalar_prefetch = 0 : i64, scratch_operands = 0 : i64, tpu.core_type = #tpu.core_type<tc>, window_params = [{transform_indices = @transform_0, window_bounds = array<i64: 32, 32>}, {transform_indices = @transform_1, window_bounds = array<i64: 32, 32>}, {transform_indices = @transform_2, window_bounds = array<i64: 32, 32>}, {pipeline_mode = #tpu.pipeline_mode<synchronous>, transform_indices = @transform_3, window_bounds = array<i64: 32, 32>}, {pipeline_mode = #tpu.pipeline_mode<synchronous>, transform_indices = @transform_4, window_bounds = array<i64: 32, 32>}, {pipeline_mode = #tpu.pipeline_mode<synchronous>, transform_indices = @transform_5, window_bounds = array<i64: 32, 32>}, {pipeline_mode = #tpu.pipeline_mode<synchronous>, transform_indices = @transform_6, window_bounds = array<i64: 1, 32>}, {pipeline_mode = #tpu.pipeline_mode<synchronous>, transform_indices = @transform_7, window_bounds = array<i64: 1, 32>}, {pipeline_mode = #tpu.pipeline_mode<synchronous>, transform_indices = @transform_8, window_bounds = array<i64: 1, 32>}, {transform_indices = @transform_9, window_bounds = array<i64: 32, 32>}, {transform_indices = @transform_10, window_bounds = array<i64: 32, 32>}, {transform_indices = @transform_11, window_bounds = array<i64: 32, 32>}]} {
    %c0 = arith.constant 0 : index
    %c0_0 = arith.constant 0 : index
    %0 = vector.load %arg1[%c0, %c0_0] : memref<32x32xf32, #tpu.memory_space<vmem>>, vector<32x32xf32>
    %c0_1 = arith.constant 0 : index
    %c0_2 = arith.constant 0 : index
    %1 = vector.load %arg4[%c0_1, %c0_2] : memref<32x32xf32, #tpu.memory_space<vmem>>, vector<32x32xf32>
    %cst = arith.constant dense<0.000000e+00> : vector<32x32xf32>
    %2 = tpu.matmul %0, %1, %cst {dimension_numbers = #tpu.dot_dimension_numbers<[1], [0], [0], [1], [0, 0, 1, 1], [], []>} : vector<32x32xf32>, vector<32x32xf32>, vector<32x32xf32> -> vector<32x32xf32>
    %c0_3 = arith.constant 0 : index
    %c0_4 = arith.constant 0 : index
    %3 = vector.load %arg7[%c0_3, %c0_4] : memref<1x32xf32, #tpu.memory_space<vmem>>, vector<1x32xf32>
    %4 = vector.broadcast %3 : vector<1x32xf32> to vector<32x32xf32>
    %5 = arith.addf %2, %4 : vector<32x32xf32>
    %c0_5 = arith.constant 0 : index
    %c0_6 = arith.constant 0 : index
    %6 = vector.load %arg10[%c0_5, %c0_6] : memref<32x32xf32, #tpu.memory_space<vmem>>, vector<32x32xf32>
    tpu.vector_store %arg10[%c0_5, %c0_6], %5 {strides = array<i32>} : memref<32x32xf32, #tpu.memory_space<vmem>>, vector<32x32xf32>,
    %c0_7 = arith.constant 0 : index
    %c0_8 = arith.constant 0 : index
    %7 = vector.load %arg2[%c0_7, %c0_8] : memref<32x32xf32, #tpu.memory_space<vmem>>, vector<32x32xf32>
    %c0_9 = arith.constant 0 : index
    %c0_10 = arith.constant 0 : index
    %8 = vector.load %arg5[%c0_9, %c0_10] : memref<32x32xf32, #tpu.memory_space<vmem>>, vector<32x32xf32>
    %cst_11 = arith.constant dense<0.000000e+00> : vector<32x32xf32>
    %9 = tpu.matmul %7, %8, %cst_11 {dimension_numbers = #tpu.dot_dimension_numbers<[1], [0], [0], [1], [0, 0, 1, 1], [], []>} : vector<32x32xf32>, vector<32x32xf32>, vector<32x32xf32> -> vector<32x32xf32>
    %c0_12 = arith.constant 0 : index
    %c0_13 = arith.constant 0 : index
    %10 = vector.load %arg8[%c0_12, %c0_13] : memref<1x32xf32, #tpu.memory_space<vmem>>, vector<1x32xf32>
    %11 = vector.broadcast %10 : vector<1x32xf32> to vector<32x32xf32>
    %12 = arith.addf %9, %11 : vector<32x32xf32>
    %c0_14 = arith.constant 0 : index
    %c0_15 = arith.constant 0 : index
    %13 = vector.load %arg11[%c0_14, %c0_15] : memref<32x32xf32, #tpu.memory_space<vmem>>, vector<32x32xf32>
    tpu.vector_store %arg11[%c0_14, %c0_15], %12 {strides = array<i32>} : memref<32x32xf32, #tpu.memory_space<vmem>>, vector<32x32xf32>,
    %c0_16 = arith.constant 0 : index
    %c0_17 = arith.constant 0 : index
    %14 = vector.load %arg3[%c0_16, %c0_17] : memref<32x32xf32, #tpu.memory_space<vmem>>, vector<32x32xf32>
    %c0_18 = arith.constant 0 : index
    %c0_19 = arith.constant 0 : index
    %15 = vector.load %arg6[%c0_18, %c0_19] : memref<32x32xf32, #tpu.memory_space<vmem>>, vector<32x32xf32>
    %cst_20 = arith.constant dense<0.000000e+00> : vector<32x32xf32>
    %16 = tpu.matmul %14, %15, %cst_20 {dimension_numbers = #tpu.dot_dimension_numbers<[1], [0], [0], [1], [0, 0, 1, 1], [], []>} : vector<32x32xf32>, vector<32x32xf32>, vector<32x32xf32> -> vector<32x32xf32>
    %c0_21 = arith.constant 0 : index
    %c0_22 = arith.constant 0 : index
    %17 = vector.load %arg9[%c0_21, %c0_22] : memref<1x32xf32, #tpu.memory_space<vmem>>, vector<1x32xf32>
    %18 = vector.broadcast %17 : vector<1x32xf32> to vector<32x32xf32>
    %19 = arith.addf %16, %18 : vector<32x32xf32>
    %c0_23 = arith.constant 0 : index
    %c0_24 = arith.constant 0 : index
    %20 = vector.load %arg12[%c0_23, %c0_24] : memref<32x32xf32, #tpu.memory_space<vmem>>, vector<32x32xf32>
    tpu.vector_store %arg12[%c0_23, %c0_24], %19 {strides = array<i32>} : memref<32x32xf32, #tpu.memory_space<vmem>>, vector<32x32xf32>,
    return
  }
  func.func @transform_0(%arg0: i32) -> (i32, i32) {
    %c0_i32 = arith.constant 0 : i32
    %c0_i32_0 = arith.constant 0 : i32
    return %arg0, %c0_i32 : i32, i32
  }
  func.func @transform_1(%arg0: i32) -> (i32, i32) {
    %c0_i32 = arith.constant 0 : i32
    %c0_i32_0 = arith.constant 0 : i32
    return %arg0, %c0_i32 : i32, i32
  }
  func.func @transform_2(%arg0: i32) -> (i32, i32) {
    %c0_i32 = arith.constant 0 : i32
    %c0_i32_0 = arith.constant 0 : i32
    return %arg0, %c0_i32 : i32, i32
  }
  func.func @transform_3(%arg0: i32) -> (i32, i32) {
    %c0_i32 = arith.constant 0 : i32
    %c0_i32_0 = arith.constant 0 : i32
    %c0_i32_1 = arith.constant 0 : i32
    return %c0_i32, %c0_i32_0 : i32, i32
  }
  func.func @transform_4(%arg0: i32) -> (i32, i32) {
    %c0_i32 = arith.constant 0 : i32
    %c0_i32_0 = arith.constant 0 : i32
    %c0_i32_1 = arith.constant 0 : i32
    return %c0_i32, %c0_i32_0 : i32, i32
  }
  func.func @transform_5(%arg0: i32) -> (i32, i32) {
    %c0_i32 = arith.constant 0 : i32
    %c0_i32_0 = arith.constant 0 : i32
    %c0_i32_1 = arith.constant 0 : i32
    return %c0_i32, %c0_i32_0 : i32, i32
  }
  func.func @transform_6(%arg0: i32) -> (i32, i32) {
    %c0_i32 = arith.constant 0 : i32
    %c0_i32_0 = arith.constant 0 : i32
    %c0_i32_1 = arith.constant 0 : i32
    return %c0_i32, %c0_i32_0 : i32, i32
  }
  func.func @transform_7(%arg0: i32) -> (i32, i32) {
    %c0_i32 = arith.constant 0 : i32
    %c0_i32_0 = arith.constant 0 : i32
    %c0_i32_1 = arith.constant 0 : i32
    return %c0_i32, %c0_i32_0 : i32, i32
  }
  func.func @transform_8(%arg0: i32) -> (i32, i32) {
    %c0_i32 = arith.constant 0 : i32
    %c0_i32_0 = arith.constant 0 : i32
    %c0_i32_1 = arith.constant 0 : i32
    return %c0_i32, %c0_i32_0 : i32, i32
  }
  func.func @transform_9(%arg0: i32) -> (i32, i32) {
    %c0_i32 = arith.constant 0 : i32
    %c0_i32_0 = arith.constant 0 : i32
    return %arg0, %c0_i32 : i32, i32
  }
  func.func @transform_10(%arg0: i32) -> (i32, i32) {
    %c0_i32 = arith.constant 0 : i32
    %c0_i32_0 = arith.constant 0 : i32
    return %arg0, %c0_i32 : i32, i32
  }
  func.func @transform_11(%arg0: i32) -> (i32, i32) {
    %c0_i32 = arith.constant 0 : i32
    %c0_i32_0 = arith.constant 0 : i32
    return %arg0, %c0_i32 : i32, i32
  }
}

</mosaic_0001>

<llo_original>
// kernel: tpu_custom_call.1
$region0: #{tpu_custom_call.1}
  #allocation0 [shape = 'u32[]', space=smem, size = 0x4, offset = 0x4, fixed_abs, tag = 'smem constant byte address 0x4 - core index']
  #allocation1 [shape = 'u32[72,128]{1,0:T(1,128)}', space=vmem, size = 0x9000, scoped, tag = 'internal scratch']
  %s0 = inlined_call_operand.hbm [shape: f32[32,32], index: 0, kind: input, shape index: {}]
  %s1 = inlined_call_operand.hbm [shape: f32[32,32], index: 1, kind: input, shape index: {}]
  %s2 = inlined_call_operand.hbm [shape: f32[32,32], index: 2, kind: input, shape index: {}]
  %s3 = inlined_call_operand.hbm [shape: f32[32,32], index: 3, kind: input, shape index: {}]
  %s4 = inlined_call_operand.hbm [shape: f32[32,32], index: 4, kind: input, shape index: {}]
  %s5 = inlined_call_operand.hbm [shape: f32[32,32], index: 5, kind: input, shape index: {}]
  %s6 = inlined_call_operand.vmem [shape: f32[1,32], index: 6, kind: input, shape index: {}]
  %s7 = inlined_call_operand.vmem [shape: f32[1,32], index: 7, kind: input, shape index: {}]
  %s8 = inlined_call_operand.vmem [shape: f32[1,32], index: 8, kind: input, shape index: {}]
  %s9 = inlined_call_operand.hbm [shape: f32[32,32], index: 9, kind: output, shape index: {0}]
  %s10 = inlined_call_operand.hbm [shape: f32[32,32], index: 10, kind: output, shape index: {1}]
  %s11 = inlined_call_operand.hbm [shape: f32[32,32], index: 11, kind: output, shape index: {2}]
  %12 = xla_tuple %s9, %s10, %s11
  %s13 = sld [smem:[#allocation0]]
  $region86: #{tpu_custom_call.1} parent=0
    _
  %s15 = ssub.s32 1, %s13
  %s16 = scalar_select 0, %s15, %s13
  $region1: #{tpu_custom_call.1} parent=0
    #allocation2 [shape = 'u8[16384]{0}', space=vmem, size = 0x4000, scoped, tag = 'input window, operand 0, single buffered']
    #allocation3 [shape = 's32[1]{0}', space=sflag, size = 0x4, scoped, tag = 'scoped memory for tpu_custom_call.1']
    #allocation4 [shape = 's32[1]{0}', space=sflag, size = 0x4, scoped, tag = 'scoped memory for tpu_custom_call.1']
    #allocation5 [shape = 'u8[16384]{0}', space=vmem, size = 0x4000, scoped, tag = 'input window, operand 1, single buffered']
    #allocation6 [shape = 's32[1]{0}', space=sflag, size = 0x4, scoped, tag = 'scoped memory for tpu_custom_call.1']
    #allocation7 [shape = 'u8[16384]{0}', space=vmem, size = 0x4000, scoped, tag = 'input window, operand 2, single buffered']
    #allocation8 [shape = 'u8[16384]{0}', space=vmem, size = 0x4000, scoped, tag = 'input window, operand 3, single buffered']
    #allocation9 [shape = 's32[1]{0}', space=sflag, size = 0x4, scoped, tag = 'scoped memory for tpu_custom_call.1']
    #allocation10 [shape = 'u8[16384]{0}', space=vmem, size = 0x4000, scoped, tag = 'input window, operand 4, single buffered']
    #allocation11 [shape = 'u8[16384]{0}', space=vmem, size = 0x4000, scoped, tag = 'input window, operand 5, single buffered']
    #allocation12 [shape = 's32[1]{0}', space=sflag, size = 0x4, scoped, tag = 'scoped memory for tpu_custom_call.1']
    #allocation13 [shape = 'u8[16384]{0}', space=vmem, size = 0x4000, scoped, tag = 'output window, operand 0, single buffered']
    #allocation14 [shape = 'u8[16384]{0}', space=vmem, size = 0x4000, scoped, tag = 'output window, operand 1, single buffered']
    #allocation15 [shape = 's32[1]{0}', space=sflag, size = 0x4, scoped, tag = 'scoped memory for tpu_custom_call.1']
    #allocation16 [shape = 'u8[16384]{0}', space=vmem, size = 0x4000, scoped, tag = 'output window, operand 2, single buffered']
    %17 = vsyncpa [#allocation3], 0
    %18 = vsyncpa [#allocation6], 0
    %19 = vsyncpa [#allocation9], 0
    %20 = vsyncpa [#allocation12], 0
    %21 = vsyncpa [#allocation4], 0
    %22 = vsyncpa [#allocation15], 0
    // Predicated region
    $region2: #{tpu_custom_call.1} parent=1 // pred_check
      _
    $region3: #{tpu_custom_call.1} parent=1 // pred_check_branch
      %24 = sbr.rel (0) target = $region5
    $region4: #{tpu_custom_call.1} parent=1 // pred_region
      %26 = vsyncadd [#allocation3], 0
      %s27 = sshll.u32 %s0, 4
      %s28 = int_to_ptr.hbm [resolvable:$true] %s27
      %s29 = sshll.u32 [#allocation2], 4
      %s30 = int_to_ptr.vmem [resolvable:$true] %s29
      %35 = dma.hbm_to_vmem [thread:$0]  %s28, 512, %s30, [#allocation3], 128, 128, 8
    $region5: #{tpu_custom_call.1} parent=1 // pred_fallthru
      _
    // Predicated region
    $region6: #{tpu_custom_call.1} parent=1 // pred_check
      _
    $region7: #{tpu_custom_call.1} parent=1 // pred_check_branch
      %37 = sbr.rel (0) target = $region9
    $region8: #{tpu_custom_call.1} parent=1 // pred_region
      %39 = vsyncadd [#allocation6], 0
      %s40 = sshll.u32 %s1, 4
      %s41 = int_to_ptr.hbm [resolvable:$true] %s40
      %s42 = sshll.u32 [#allocation5], 4
      %s43 = int_to_ptr.vmem [resolvable:$true] %s42
      %48 = dma.hbm_to_vmem [thread:$0]  %s41, 512, %s43, [#allocation6], 128, 128, 8
    $region9: #{tpu_custom_call.1} parent=1 // pred_fallthru
      _
    // Predicated region
    $region10: #{tpu_custom_call.1} parent=1 // pred_check
      _
    $region11: #{tpu_custom_call.1} parent=1 // pred_check_branch
      %50 = sbr.rel (0) target = $region13
    $region12: #{tpu_custom_call.1} parent=1 // pred_region
      %52 = vsyncadd [#allocation6], 0
      %s53 = sshll.u32 %s2, 4
      %s54 = int_to_ptr.hbm [resolvable:$true] %s53
      %s55 = sshll.u32 [#allocation7], 4
      %s56 = int_to_ptr.vmem [resolvable:$true] %s55
      %61 = dma.hbm_to_vmem [thread:$0]  %s54, 512, %s56, [#allocation6], 128, 128, 8
    $region13: #{tpu_custom_call.1} parent=1 // pred_fallthru
      _
    // Predicated region
    $region14: #{tpu_custom_call.1} parent=1 // pred_check
      _
    $region15: #{tpu_custom_call.1} parent=1 // pred_check_branch
      %63 = sbr.rel (0) target = $region17
    $region16: #{tpu_custom_call.1} parent=1 // pred_region
      %65 = vsyncadd [#allocation9], 0
      %s66 = sshll.u32 %s3, 4
      %s67 = int_to_ptr.hbm [resolvable:$true] %s66
      %s68 = sshll.u32 [#allocation8], 4
      %s69 = int_to_ptr.vmem [resolvable:$true] %s68
      %74 = dma.hbm_to_vmem [thread:$0]  %s67, 512, %s69, [#allocation9], 128, 128, 8
    $region17: #{tpu_custom_call.1} parent=1 // pred_fallthru
      _
    // Predicated region
    $region18: #{tpu_custom_call.1} parent=1 // pred_check
      _
    $region19: #{tpu_custom_call.1} parent=1 // pred_check_branch
      %76 = sbr.rel (0) target = $region21
    $region20: #{tpu_custom_call.1} parent=1 // pred_region
      %78 = vsyncadd [#allocation9], 0
      %s79 = sshll.u32 %s4, 4
      %s80 = int_to_ptr.hbm [resolvable:$true] %s79
      %s81 = sshll.u32 [#allocation10], 4
      %s82 = int_to_ptr.vmem [resolvable:$true] %s81
      %87 = dma.hbm_to_vmem [thread:$0]  %s80, 512, %s82, [#allocation9], 128, 128, 8
    $region21: #{tpu_custom_call.1} parent=1 // pred_fallthru
      _
    // Predicated region
    $region22: #{tpu_custom_call.1} parent=1 // pred_check
      _
    $region23: #{tpu_custom_call.1} parent=1 // pred_check_branch
      %89 = sbr.rel (0) target = $region25
    $region24: #{tpu_custom_call.1} parent=1 // pred_region
      %91 = vsyncadd [#allocation12], 0
      %s92 = sshll.u32 %s5, 4
      %s93 = int_to_ptr.hbm [resolvable:$true] %s92
      %s94 = sshll.u32 [#allocation11], 4
      %s95 = int_to_ptr.vmem [resolvable:$true] %s94
      %100 = dma.hbm_to_vmem [thread:$0]  %s93, 512, %s95, [#allocation12], 128, 128, 8
    $region25: #{tpu_custom_call.1} parent=1 // pred_fallthru
      _
    // Predicated region
    $region26: #{tpu_custom_call.1} parent=1 // pred_check
      _
    $region27: #{tpu_custom_call.1} parent=1 // pred_check_branch
      %102 = sbr.rel (0) target = $region29
    $region28: #{tpu_custom_call.1} parent=1 // pred_region
      _
    $region29: #{tpu_custom_call.1} parent=1 // pred_fallthru
      _
    // Predicated region
    $region30: #{tpu_custom_call.1} parent=1 // pred_check
      _
    $region31: #{tpu_custom_call.1} parent=1 // pred_check_branch
      %104 = sbr.rel (0) target = $region33
    $region32: #{tpu_custom_call.1} parent=1 // pred_region
      _
    $region33: #{tpu_custom_call.1} parent=1 // pred_fallthru
      _
    // Predicated region
    $region34: #{tpu_custom_call.1} parent=1 // pred_check
      _
    $region35: #{tpu_custom_call.1} parent=1 // pred_check_branch
      %106 = sbr.rel (0) target = $region37
    $region36: #{tpu_custom_call.1} parent=1 // pred_region
      _
    $region37: #{tpu_custom_call.1} parent=1 // pred_fallthru
      _
    // Predicated region
    $region38: #{tpu_custom_call.1} parent=1 // pred_check
      _
    $region39: #{tpu_custom_call.1} parent=1 // pred_check_branch
      %108 = sbr.rel (0) target = $region41
    $region40: #{tpu_custom_call.1} parent=1 // pred_region
      %110 = dma.done [#allocation3], 512
    $region41: #{tpu_custom_call.1} parent=1 // pred_fallthru
      _
    // Predicated region
    $region42: #{tpu_custom_call.1} parent=1 // pred_check
      _
    $region43: #{tpu_custom_call.1} parent=1 // pred_check_branch
      %112 = sbr.rel (0) target = $region45
    $region44: #{tpu_custom_call.1} parent=1 // pred_region
      %114 = dma.done [#allocation6], 512
    $region45: #{tpu_custom_call.1} parent=1 // pred_fallthru
      _
    // Predicated region
    $region46: #{tpu_custom_call.1} parent=1 // pred_check
      _
    $region47: #{tpu_custom_call.1} parent=1 // pred_check_branch
      %116 = sbr.rel (0) target = $region49
    $region48: #{tpu_custom_call.1} parent=1 // pred_region
      %118 = dma.done [#allocation6], 512
    $region49: #{tpu_custom_call.1} parent=1 // pred_fallthru
      _
    // Predicated region
    $region50: #{tpu_custom_call.1} parent=1 // pred_check
      _
    $region51: #{tpu_custom_call.1} parent=1 // pred_check_branch
      %120 = sbr.rel (0) target = $region53
    $region52: #{tpu_custom_call.1} parent=1 // pred_region
      %122 = dma.done [#allocation9], 512
    $region53: #{tpu_custom_call.1} parent=1 // pred_fallthru
      _
    // Predicated region
    $region54: #{tpu_custom_call.1} parent=1 // pred_check
      _
    $region55: #{tpu_custom_call.1} parent=1 // pred_check_branch
      %124 = sbr.rel (0) target = $region57
    $region56: #{tpu_custom_call.1} parent=1 // pred_region
      %126 = dma.done [#allocation9], 512
    $region57: #{tpu_custom_call.1} parent=1 // pred_fallthru
      _
    // Predicated region
    $region58: #{tpu_custom_call.1} parent=1 // pred_check
      _
    $region59: #{tpu_custom_call.1} parent=1 // pred_check_branch
      %128 = sbr.rel (0) target = $region61
    $region60: #{tpu_custom_call.1} parent=1 // pred_region
      %130 = dma.done [#allocation12], 512
    $region61: #{tpu_custom_call.1} parent=1 // pred_fallthru
      _
    %v131 = vld [vmem:[#allocation2] sm:$0xff]
    %v132 = vld [vmem:[#allocation2 + $0x8] sm:$0xff]
    %v133 = vld [vmem:[#allocation2 + $0x10] sm:$0xff]
    %v134 = vld [vmem:[#allocation2 + $0x18] sm:$0xff]
    %v135 = vld [vmem:[#allocation8] sm:$0xff]
    %v136 = vld [vmem:[#allocation8 + $0x8] sm:$0xff]
    %v137 = vld [vmem:[#allocation8 + $0x10] sm:$0xff]
    %v138 = vld [vmem:[#allocation8 + $0x18] sm:$0xff]
    %v139 = vld [vmem:[%s6] sm:$0x1]
    %v141 = vperm.slane %v139, 0
    %vm143 = vcmask 261120
    %v145 = vsel %vm143, %v131, 0
    %v148 = vsel %vm143, %v132, 0
    %v151 = vsel %vm143, %v133, 0
    %v154 = vsel %vm143, %v134, 0
    %156 = vmatpush.msra.mxu0 0.0
    %157 = vmatpush.msra.mxu0 0.0
    %158 = vmatpush.msra.mxu0 0.0
    %159 = vmatpush.msra.mxu0 0.0
    %160 = vmatpush.msra.mxu0 0.0
    %161 = vmatpush.msra.mxu0 0.0
    %162 = vmatpush.msra.mxu0 0.0
    %163 = vmatpush.msra.mxu0 0.0
    %164 = vmatpush.msra.mxu0 0.0
    %165 = vmatpush.msra.mxu0 0.0
    %166 = vmatpush.msra.mxu0 0.0
    %167 = vmatpush.msra.mxu0 0.0
    %168 = vmatpush.msra.mxu0 %v138
    %169 = vmatpush.msra.mxu0 %v137
    %170 = vmatpush.msra.mxu0 %v136
    %171 = vmatpush.msra.mxu0 %v135
    %172 = vmatmul.f32.gmra.mxu0 %v145
    %v173 = vpop.f32.mrf.mxu0
    %v174 = vadd.f32 %v141, %v173
    %175 = vmatmul.f32.gmra.mxu0 %v148
    %v176 = vpop.f32.mrf.mxu0
    %v177 = vadd.f32 %v141, %v176
    %178 = vmatmul.f32.gmra.mxu0 %v151
    %v179 = vpop.f32.mrf.mxu0
    %v180 = vadd.f32 %v141, %v179
    %181 = vmatmul.f32.gmra.mxu0 %v154
    %v182 = vpop.f32.mrf.mxu0
    %v183 = vadd.f32 %v141, %v182
    %184 = vdwg.mxu0
    %185 = vst.msk [vmem:[#allocation13] sm:$0xff] %vm143, %v174
    %186 = vst.msk [vmem:[#allocation13 + $0x8] sm:$0xff] %vm143, %v177
    %187 = vst.msk [vmem:[#allocation13 + $0x10] sm:$0xff] %vm143, %v180
    %188 = vst.msk [vmem:[#allocation13 + $0x18] sm:$0xff] %vm143, %v183
    %v189 = vld [vmem:[#allocation5] sm:$0xff]
    %v190 = vld [vmem:[#allocation5 + $0x8] sm:$0xff]
    %v191 = vld [vmem:[#allocation5 + $0x10] sm:$0xff]
    %v192 = vld [vmem:[#allocation5 + $0x18] sm:$0xff]
    %v193 = vld [vmem:[#allocation10] sm:$0xff]
    %v194 = vld [vmem:[#allocation10 + $0x8] sm:$0xff]
    %v195 = vld [vmem:[#allocation10 + $0x10] sm:$0xff]
    %v196 = vld [vmem:[#allocation10 + $0x18] sm:$0xff]
    %v197 = vld [vmem:[%s7] sm:$0x1]
    %v199 = vperm.slane %v197, 0
    %v202 = vsel %vm143, %v189, 0
    %v205 = vsel %vm143, %v190, 0
    %v208 = vsel %vm143, %v191, 0
    %v211 = vsel %vm143, %v192, 0
    %213 = vmatpush.msra.mxu0 0.0
    %214 = vmatpush.msra.mxu0 0.0
    %215 = vmatpush.msra.mxu0 0.0
    %216 = vmatpush.msra.mxu0 0.0
    %217 = vmatpush.msra.mxu0 0.0
    %218 = vmatpush.msra.mxu0 0.0
    %219 = vmatpush.msra.mxu0 0.0
    %220 = vmatpush.msra.mxu0 0.0
    %221 = vmatpush.msra.mxu0 0.0
    %222 = vmatpush.msra.mxu0 0.0
    %223 = vmatpush.msra.mxu0 0.0
    %224 = vmatpush.msra.mxu0 0.0
    %225 = vmatpush.msra.mxu0 %v196
    %226 = vmatpush.msra.mxu0 %v195
    %227 = vmatpush.msra.mxu0 %v194
    %228 = vmatpush.msra.mxu0 %v193
    %229 = vmatmul.f32.gmra.mxu0 %v202
    %v230 = vpop.f32.mrf.mxu0
    %v231 = vadd.f32 %v199, %v230
    %232 = vmatmul.f32.gmra.mxu0 %v205
    %v233 = vpop.f32.mrf.mxu0
    %v234 = vadd.f32 %v199, %v233
    %235 = vmatmul.f32.gmra.mxu0 %v208
    %v236 = vpop.f32.mrf.mxu0
    %v237 = vadd.f32 %v199, %v236
    %238 = vmatmul.f32.gmra.mxu0 %v211
    %v239 = vpop.f32.mrf.mxu0
    %v240 = vadd.f32 %v199, %v239
    %241 = vdwg.mxu0
    %242 = vst.msk [vmem:[#allocation14] sm:$0xff] %vm143, %v231
    %243 = vst.msk [vmem:[#allocation14 + $0x8] sm:$0xff] %vm143, %v234
    %244 = vst.msk [vmem:[#allocation14 + $0x10] sm:$0xff] %vm143, %v237
    %245 = vst.msk [vmem:[#allocation14 + $0x18] sm:$0xff] %vm143, %v240
    %v246 = vld [vmem:[#allocation7] sm:$0xff]
    %v247 = vld [vmem:[#allocation7 + $0x8] sm:$0xff]
    %v248 = vld [vmem:[#allocation7 + $0x10] sm:$0xff]
    %v249 = vld [vmem:[#allocation7 + $0x18] sm:$0xff]
    %v250 = vld [vmem:[#allocation11] sm:$0xff]
    %v251 = vld [vmem:[#allocation11 + $0x8] sm:$0xff]
    %v252 = vld [vmem:[#allocation11 + $0x10] sm:$0xff]
    %v253 = vld [vmem:[#allocation11 + $0x18] sm:$0xff]
    %v254 = vld [vmem:[%s8] sm:$0x1]
    %v256 = vperm.slane %v254, 0
    %v259 = vsel %vm143, %v246, 0
    %v262 = vsel %vm143, %v247, 0
    %v265 = vsel %vm143, %v248, 0
    %v268 = vsel %vm143, %v249, 0
    %270 = vmatpush.msra.mxu0 0.0
    %271 = vmatpush.msra.mxu0 0.0
    %272 = vmatpush.msra.mxu0 0.0
    %273 = vmatpush.msra.mxu0 0.0
    %274 = vmatpush.msra.mxu0 0.0
    %275 = vmatpush.msra.mxu0 0.0
    %276 = vmatpush.msra.mxu0 0.0
    %277 = vmatpush.msra.mxu0 0.0
    %278 = vmatpush.msra.mxu0 0.0
    %279 = vmatpush.msra.mxu0 0.0
    %280 = vmatpush.msra.mxu0 0.0
    %281 = vmatpush.msra.mxu0 0.0
    %282 = vmatpush.msra.mxu0 %v253
    %283 = vmatpush.msra.mxu0 %v252
    %284 = vmatpush.msra.mxu0 %v251
    %285 = vmatpush.msra.mxu0 %v250
    %286 = vmatmul.f32.gmra.mxu0 %v259
    %v287 = vpop.f32.mrf.mxu0
    %v288 = vadd.f32 %v256, %v287
    %289 = vmatmul.f32.gmra.mxu0 %v262
    %v290 = vpop.f32.mrf.mxu0
    %v291 = vadd.f32 %v256, %v290
    %292 = vmatmul.f32.gmra.mxu0 %v265
    %v293 = vpop.f32.mrf.mxu0
    %v294 = vadd.f32 %v256, %v293
    %295 = vmatmul.f32.gmra.mxu0 %v268
    %v296 = vpop.f32.mrf.mxu0
    %v297 = vadd.f32 %v256, %v296
    %298 = vdwg.mxu0
    %299 = vst.msk [vmem:[#allocation16] sm:$0xff] %vm143, %v288
    %300 = vst.msk [vmem:[#allocation16 + $0x8] sm:$0xff] %vm143, %v291
    %301 = vst.msk [vmem:[#allocation16 + $0x10] sm:$0xff] %vm143, %v294
    %302 = vst.msk [vmem:[#allocation16 + $0x18] sm:$0xff] %vm143, %v297
    // Predicated region
    $region62: #{tpu_custom_call.1} parent=1 // pred_check
      _
    $region63: #{tpu_custom_call.1} parent=1 // pred_check_branch
      %304 = sbr.rel (0) target = $region65
    $region64: #{tpu_custom_call.1} parent=1 // pred_region
      %306 = vsyncadd [#allocation4], 0
      %s307 = sshll.u32 [#allocation13], 4
      %s308 = int_to_ptr.vmem [resolvable:$true] %s307
      %s309 = sshll.u32 %s9, 4
      %s310 = int_to_ptr.hbm [resolvable:$true] %s309
      %315 = dma.vmem_to_hbm [thread:$0]  %s308, 512, %s310, [#allocation4], 128, 128, 8
    $region65: #{tpu_custom_call.1} parent=1 // pred_fallthru
      _
    // Predicated region
    $region66: #{tpu_custom_call.1} parent=1 // pred_check
      _
    $region67: #{tpu_custom_call.1} parent=1 // pred_check_branch
      %317 = sbr.rel (0) target = $region69
    $region68: #{tpu_custom_call.1} parent=1 // pred_region
      %319 = vsyncadd [#allocation15], 0
      %s320 = sshll.u32 [#allocation14], 4
      %s321 = int_to_ptr.vmem [resolvable:$true] %s320
      %s322 = sshll.u32 %s10, 4
      %s323 = int_to_ptr.hbm [resolvable:$true] %s322
      %328 = dma.vmem_to_hbm [thread:$0]  %s321, 512, %s323, [#allocation15], 128, 128, 8
    $region69: #{tpu_custom_call.1} parent=1 // pred_fallthru
      _
    // Predicated region
    $region70: #{tpu_custom_call.1} parent=1 // pred_check
      _
    $region71: #{tpu_custom_call.1} parent=1 // pred_check_branch
      %330 = sbr.rel (0) target = $region73
    $region72: #{tpu_custom_call.1} parent=1 // pred_region
      %332 = vsyncadd [#allocation15], 0
      %s333 = sshll.u32 [#allocation16], 4
      %s334 = int_to_ptr.vmem [resolvable:$true] %s333
      %s335 = sshll.u32 %s11, 4
      %s336 = int_to_ptr.hbm [resolvable:$true] %s335
      %341 = dma.vmem_to_hbm [thread:$0]  %s334, 512, %s336, [#allocation15], 128, 128, 8
    $region73: #{tpu_custom_call.1} parent=1 // pred_fallthru
      _
    // Predicated region
    $region74: #{tpu_custom_call.1} parent=1 // pred_check
      _
    $region75: #{tpu_custom_call.1} parent=1 // pred_check_branch
      %343 = sbr.rel (0) target = $region77
    $region76: #{tpu_custom_call.1} parent=1 // pred_region
      %345 = dma.done [#allocation4], 512
    $region77: #{tpu_custom_call.1} parent=1 // pred_fallthru
      _
    // Predicated region
    $region78: #{tpu_custom_call.1} parent=1 // pred_check
      _
    $region79: #{tpu_custom_call.1} parent=1 // pred_check_branch
      %347 = sbr.rel (0) target = $region81
    $region80: #{tpu_custom_call.1} parent=1 // pred_region
      %349 = dma.done [#allocation15], 512
    $region81: #{tpu_custom_call.1} parent=1 // pred_fallthru
      _
    // Predicated region
    $region82: #{tpu_custom_call.1} parent=1 // pred_check
      _
    $region83: #{tpu_custom_call.1} parent=1 // pred_check_branch
      %351 = sbr.rel (0) target = $region85
    $region84: #{tpu_custom_call.1} parent=1 // pred_region
      %353 = dma.done [#allocation15], 512
    $region85: #{tpu_custom_call.1} parent=1 // pred_fallthru
      _
    %354 = vsyncpa [#allocation3], 1
    %355 = vsyncpa [#allocation6], 1
    %356 = vsyncpa [#allocation9], 1
    %357 = vsyncpa [#allocation12], 1
    %358 = vsyncpa [#allocation4], 1
    %359 = vsyncpa [#allocation15], 1

</llo_original>
